<compile_context>
chip_gen: v6e
topology: v6e:2x2x1
jax: 0.10.0
libtpu: 0.0.40
codegen_flags: <defaults>
</compile_context>

<pallas_src>
import math

import jax
import jax.numpy as jnp
from jax.experimental import pallas as pl
from jax.experimental.pallas import tpu as pltpu


def _round_up(x, m):
    return (x + m - 1) // m * m


def _cdiv(a, b):
    return (a + b - 1) // b


# ----------------------------- kernels ---------------------------------------
def _tip_resident_kernel(e_ref, keys_t_ref, values_ref, text_t_ref, out_ref):
    """Whole cache resident in VMEM; grid streams over N tiles only.

    e_ref      : (tn, D)         bf16
    keys_t_ref : (D, m_pad)      bf16  beta-prescaled, pre-transposed
    values_ref : (m_pad, c_pad)  bf16  alpha*exp(-beta)-prescaled one-hot labels
    text_t_ref : (D, c_pad)      bf16  vlm_logit_scale-prescaled, pre-transposed
    out_ref    : (tn, c_pad)     f32
    """
    text = jnp.dot(e_ref[...], text_t_ref[...],
                   preferred_element_type=jnp.float32)            # (tn, C)  MXU
    aff = jnp.dot(e_ref[...], keys_t_ref[...],
                  preferred_element_type=jnp.float32)             # beta*affinity, MXU
    act = jnp.exp(aff)              # f32 EUP; exp(-beta) folded into values'
    out_ref[...] = text + jnp.dot(act.astype(jnp.bfloat16), values_ref[...],
                                  preferred_element_type=jnp.float32)


def _tip_streamed_kernel(e_ref, keys_t_ref, values_ref, text_t_ref, out_ref):
    """2-D grid (N tiles x M tiles); f32 output block is the resident accumulator."""
    k = pl.program_id(1)

    @pl.when(k == 0)
    def _():
        out_ref[...] = jnp.dot(e_ref[...], text_t_ref[...],
                               preferred_element_type=jnp.float32)

    aff = jnp.dot(e_ref[...], keys_t_ref[...],
                  preferred_element_type=jnp.float32)             # (tn, tm)
    act = jnp.exp(aff)              # exp(-beta) folded into values'
    out_ref[...] += jnp.dot(act.astype(jnp.bfloat16), values_ref[...],
                            preferred_element_type=jnp.float32)


# ------------------------- sizing helpers ------------------------------------
def _vmem_budget_bytes():
    """Generation-aware scoped-VMEM limit, with headroom for pipeline scratch."""
    try:
        phys = int(pltpu.get_tpu_info().vmem_capacity_bytes)
    except Exception:
        phys = 64 * 1024 * 1024            # conservative (v7x-sized) fallback
    return max(min(phys - 16 * 1024 * 1024, 100 * 1024 * 1024),
               24 * 1024 * 1024)


def _resident_bytes(tn, d, m_pad, c_pad):
    # Sized with default double-buffering so the resident choice stays safe
    # even if single-buffering (pl.Buffered(1)) is unavailable.
    return (2 * d * m_pad * 2            # keys^T
            + 2 * m_pad * c_pad * 2      # values'
            + 2 * d * c_pad * 2          # text^T
            + 2 * tn * d * 2             # embeds tile (double buffered)
            + 2 * tn * c_pad * 4)        # f32 output tile (double buffered)


def _streamed_bytes(tn, tm, d, c_pad):
    return (2 * tn * d * 2
            + 2 * d * tm * 2
            + 2 * tm * c_pad * 2
            + 2 * d * c_pad * 2
            + 2 * tn * c_pad * 4)


_Buffered = getattr(pl, "Buffered", None)


def _block_spec(block_shape, index_map, single_buffer):
    """BlockSpec, single-buffered (constant-index resident block) when requested."""
    if single_buffer and _Buffered is not None:
        return pl.BlockSpec(block_shape, index_map, pipeline_mode=_Buffered(1))
    return pl.BlockSpec(block_shape, index_map)


# ------------------------------ wrapper ---------------------------------------
def tip_adapter_forward(embeds, cache_keys, cache_values, text_embeds,
                        *, alpha, beta, vlm_logit_scale,
                        tn_max=512, tm_max=2048, force_streamed=False):
    N, D = embeds.shape
    M = cache_keys.shape[0]
    C = text_embeds.shape[0]
    f32, bf16 = jnp.float32, jnp.bfloat16

    vmem_limit = _vmem_budget_bytes()
    budget = int(0.8 * vmem_limit)

    c_pad = _round_up(C, 128)
    m_pad128 = _round_up(M, 128)

    use_resident = (not force_streamed and
                    _resident_bytes(16, D, m_pad128, c_pad) <= budget)

    if use_resident:
        # ---- RESIDENT: grid over N only; whole cache stays in VMEM ----------
        m_pad = m_pad128
        tn_cap = min(tn_max, _round_up(N, 16))
        while tn_cap > 16 and _resident_bytes(tn_cap, D, m_pad, c_pad) > budget:
            tn_cap -= 16
        n_tiles = _cdiv(N, tn_cap)
        if n_tiles == 1 and N >= 32:
            n_tiles = 2          # let the "parallel" axis span both v7x cores
        tn = _round_up(_cdiv(N, n_tiles), 16)   # balanced, bf16-sublane aligned
        n_pad = n_tiles * tn
    else:
        # ---- STREAMED: 2-D grid, M (reduction) axis last ---------------------
        tn = min(tn_max, _round_up(N, 16))
        tm = min(_round_up(tm_max, 128), m_pad128)
        while tm > 128 and _streamed_bytes(tn, tm, D, c_pad) > budget:
            tm = max(128, _round_up(tm // 2, 128))
        while tn > 16 and _streamed_bytes(tn, tm, D, c_pad) > budget:
            tn -= 16
        # Balanced tilings to avoid near-2x padding on either axis.
        m_tiles = _cdiv(m_pad128, tm)
        tm = _round_up(_cdiv(m_pad128, m_tiles), 128)
        m_pad = m_tiles * tm
        n_tiles = _cdiv(N, tn)
        tn = _round_up(_cdiv(N, n_tiles), 16)
        n_pad = n_tiles * tn

    # ---- one-time constant preprocessing (module __init__ in a deployment) --
    #   exp(-beta*(1-aff)) @ V == exp(beta*aff) @ (exp(-beta) * V)
    keys_t = jnp.zeros((D, m_pad), bf16).at[:, :M].set(
        (float(beta) * cache_keys.astype(f32)).T.astype(bf16))
    values = jnp.zeros((m_pad, c_pad), bf16).at[:M, :C].set(
        (float(alpha) * math.exp(-float(beta))
         * cache_values.astype(f32)).astype(bf16))
    text_t = jnp.zeros((D, c_pad), bf16).at[:, :C].set(
        (float(vlm_logit_scale) * text_embeds.astype(f32)).T.astype(bf16))

    # ---- per-call input preprocessing ----------------------------------------
    e = jnp.zeros((n_pad, D), bf16).at[:N, :].set(embeds.astype(bf16))

    flops = 2 * n_pad * D * (m_pad + c_pad) + 2 * n_pad * m_pad * c_pad
    transcendentals = n_pad * m_pad

    if use_resident:
        grid = (n_tiles,)
        kernel = _tip_resident_kernel
        dims = ("parallel",)
        bytes_accessed = ((e.size + keys_t.size + values.size + text_t.size) * 2
                          + n_pad * c_pad * 4)

        def make_in_specs(single_buffer):
            return [
                pl.BlockSpec((tn, D), lambda i: (i, 0)),                     # embeds (streamed over N)
                _block_spec((D, m_pad), lambda i: (0, 0), single_buffer),    # keys^T  (resident)
                _block_spec((m_pad, c_pad), lambda i: (0, 0), single_buffer),# values' (resident)
                _block_spec((D, c_pad), lambda i: (0, 0), single_buffer),    # text^T  (resident)
            ]

        out_spec = pl.BlockSpec((tn, c_pad), lambda i: (i, 0))
    else:
        grid = (n_tiles, m_tiles)
        kernel = _tip_streamed_kernel
        dims = ("parallel", "arbitrary")
        # keys/values are re-streamed once per N tile (index_map resets with i).
        bytes_accessed = (e.size * 2
                          + (keys_t.size + values.size) * 2 * n_tiles
                          + text_t.size * 2
                          + n_pad * c_pad * 4)

        def make_in_specs(single_buffer):
            return [
                pl.BlockSpec((tn, D), lambda i, k: (i, 0)),                  # embeds (resident over M)
                pl.BlockSpec((D, tm), lambda i, k: (0, k)),                  # keys^T  (streamed over M)
                pl.BlockSpec((tm, c_pad), lambda i, k: (k, 0)),              # values' (streamed over M)
                _block_spec((D, c_pad), lambda i, k: (0, 0), single_buffer), # text^T  (resident)
            ]

        out_spec = pl.BlockSpec((tn, c_pad), lambda i, k: (i, 0))

    def run(single_buffer):
        return pl.pallas_call(
            kernel,
            out_shape=jax.ShapeDtypeStruct((n_pad, c_pad), f32),
            grid=grid,
            in_specs=make_in_specs(single_buffer),
            out_specs=out_spec,
            compiler_params=pltpu.CompilerParams(
                dimension_semantics=dims,
                vmem_limit_bytes=int(vmem_limit)),
            cost_estimate=pl.CostEstimate(
                flops=int(flops),
                transcendentals=int(transcendentals),
                bytes_accessed=int(bytes_accessed)),
        )(e, keys_t, values, text_t)

    try:
        out = jax.block_until_ready(run(True))    # single-buffered resident blocks
    except Exception:
        out = run(False)                          # fall back to default buffering

    return out[:N, :C]


# ------------------------------ reference ------------------------------------
def reference_forward(embeds, cache_keys, cache_values, text_embeds,
                      *, alpha, beta, vlm_logit_scale):
    affinity = embeds @ cache_keys.T
    cache_logits = jnp.exp(-beta * (1.0 - affinity)) @ cache_values
    text_logits = vlm_logit_scale * embeds @ text_embeds.T
    return text_logits + alpha * cache_logits


def _l2_normalize(x):
    return x / jnp.linalg.norm(x, axis=-1, keepdims=True)


if __name__ == "__main__":
    key = jax.random.PRNGKey(0)
    k_emb, k_text, k_sup, k_lab = jax.random.split(key, 4)

    # Small synthetic shapes consistent with the module's constructor:
    #   C classes, D embedding dim, M flat support samples, N query batch.
    N, D, M, C = 8, 32, 16, 4
    alpha, beta, vlm_logit_scale = 1.0, 5.5, 100.0

    # CLIP-style L2-normalized embeddings (as Tip-Adapter assumes).
    embeds = _l2_normalize(jax.random.normal(k_emb, (N, D), dtype=jnp.float32))
    text_embeds = _l2_normalize(
        jax.random.normal(k_text, (C, D), dtype=jnp.float32))
    flat_support_vid_embeds = _l2_normalize(
        jax.random.normal(k_sup, (M, D), dtype=jnp.float32))
    flat_support_vid_labels = jax.random.randint(k_lab, (M,), 0, C)

    # Buffers / parameters set up in plain JAX (glue), matching __init__:
    cache_keys = flat_support_vid_embeds                       # nn.Parameter
    cache_values = jax.nn.one_hot(flat_support_vid_labels, C,
                                  dtype=jnp.float32)           # F.one_hot().float()

    ref = reference_forward(embeds, cache_keys, cache_values, text_embeds,
                            alpha=alpha, beta=beta,
                            vlm_logit_scale=vlm_logit_scale)

    # Fast path: resident cache (auto-selected for few-shot cache sizes).
    out = jax.block_until_ready(
        tip_adapter_forward(embeds, cache_keys, cache_values, text_embeds,
                            alpha=alpha, beta=beta,
                            vlm_logit_scale=vlm_logit_scale))
    assert out.shape == (N, C)
    # bf16 MXU operands (f32 accumulation) -> loosened tolerance vs f32 ref.
    assert jnp.allclose(out, ref, rtol=5e-2, atol=5e-1), "resident path mismatch"

    # Large-M fallback path (streamed cache) — exercised explicitly here.
    out_s = jax.block_until_ready(
        tip_adapter_forward(embeds, cache_keys, cache_values, text_embeds,
                            alpha=alpha, beta=beta,
                            vlm_logit_scale=vlm_logit_scale,
                            force_streamed=True))
    assert out_s.shape == (N, C)
    assert jnp.allclose(out_s, ref, rtol=5e-2, atol=5e-1), "streamed path mismatch"

    print("KERNEL_OK")
</pallas_src>

<mosaic_0001>
module attributes {stable_mosaic.version = 11 : i64} {
  func.func @_tip_resident_kernel(%arg0: i32, %arg1: memref<16x32xbf16, #tpu.memory_space<vmem>>, %arg2: memref<32x128xbf16, #tpu.memory_space<vmem>>, %arg3: memref<128x128xbf16, #tpu.memory_space<vmem>>, %arg4: memref<32x128xbf16, #tpu.memory_space<vmem>>, %arg5: memref<16x128xf32, #tpu.memory_space<vmem>>) attributes {dimension_semantics = [#tpu.dimension_semantics<parallel>], iteration_bounds = array<i64: 1>, scalar_prefetch = 0 : i64, scratch_operands = 0 : i64, tpu.core_type = #tpu.core_type<tc>, window_params = [{transform_indices = @transform_0, window_bounds = array<i64: 16, 32>}, {pipeline_mode = #tpu.pipeline_mode<synchronous>, transform_indices = @transform_1, window_bounds = array<i64: 32, 128>}, {pipeline_mode = #tpu.pipeline_mode<synchronous>, transform_indices = @transform_2, window_bounds = array<i64: 128, 128>}, {pipeline_mode = #tpu.pipeline_mode<synchronous>, transform_indices = @transform_3, window_bounds = array<i64: 32, 128>}, {transform_indices = @transform_4, window_bounds = array<i64: 16, 128>}]} {
    %c0 = arith.constant 0 : index
    %c0_0 = arith.constant 0 : index
    %0 = vector.load %arg1[%c0, %c0_0] : memref<16x32xbf16, #tpu.memory_space<vmem>>, vector<16x32xbf16>
    %c0_1 = arith.constant 0 : index
    %c0_2 = arith.constant 0 : index
    %1 = vector.load %arg4[%c0_1, %c0_2] : memref<32x128xbf16, #tpu.memory_space<vmem>>, vector<32x128xbf16>
    %cst = arith.constant dense<0.000000e+00> : vector<16x128xf32>
    %2 = tpu.matmul %0, %1, %cst {dimension_numbers = #tpu.dot_dimension_numbers<[1], [0], [0], [1], [0, 0, 1, 1], [], []>} : vector<16x32xbf16>, vector<32x128xbf16>, vector<16x128xf32> -> vector<16x128xf32>
    %c0_3 = arith.constant 0 : index
    %c0_4 = arith.constant 0 : index
    %3 = vector.load %arg1[%c0_3, %c0_4] : memref<16x32xbf16, #tpu.memory_space<vmem>>, vector<16x32xbf16>
    %c0_5 = arith.constant 0 : index
    %c0_6 = arith.constant 0 : index
    %4 = vector.load %arg2[%c0_5, %c0_6] : memref<32x128xbf16, #tpu.memory_space<vmem>>, vector<32x128xbf16>
    %cst_7 = arith.constant dense<0.000000e+00> : vector<16x128xf32>
    %5 = tpu.matmul %3, %4, %cst_7 {dimension_numbers = #tpu.dot_dimension_numbers<[1], [0], [0], [1], [0, 0, 1, 1], [], []>} : vector<16x32xbf16>, vector<32x128xbf16>, vector<16x128xf32> -> vector<16x128xf32>
    %6 = math.exp %5 : vector<16x128xf32>
    %7 = arith.truncf %6 : vector<16x128xf32> to vector<16x128xbf16>
    %c0_8 = arith.constant 0 : index
    %c0_9 = arith.constant 0 : index
    %8 = vector.load %arg3[%c0_8, %c0_9] : memref<128x128xbf16, #tpu.memory_space<vmem>>, vector<128x128xbf16>
    %cst_10 = arith.constant dense<0.000000e+00> : vector<16x128xf32>
    %9 = tpu.matmul %7, %8, %cst_10 {dimension_numbers = #tpu.dot_dimension_numbers<[1], [0], [0], [1], [0, 0, 1, 1], [], []>} : vector<16x128xbf16>, vector<128x128xbf16>, vector<16x128xf32> -> vector<16x128xf32>
    %10 = arith.addf %2, %9 : vector<16x128xf32>
    %c0_11 = arith.constant 0 : index
    %c0_12 = arith.constant 0 : index
    %11 = vector.load %arg5[%c0_11, %c0_12] : memref<16x128xf32, #tpu.memory_space<vmem>>, vector<16x128xf32>
    tpu.vector_store %arg5[%c0_11, %c0_12], %10 {strides = array<i32>} : memref<16x128xf32, #tpu.memory_space<vmem>>, vector<16x128xf32>,
    return
  }
  func.func @transform_0(%arg0: i32) -> (i32, i32) {
    %c0_i32 = arith.constant 0 : i32
    %c0_i32_0 = arith.constant 0 : i32
    return %arg0, %c0_i32 : i32, i32
  }
  func.func @transform_1(%arg0: i32) -> (i32, i32) {
    %c0_i32 = arith.constant 0 : i32
    %c0_i32_0 = arith.constant 0 : i32
    %c0_i32_1 = arith.constant 0 : i32
    return %c0_i32, %c0_i32_0 : i32, i32
  }
  func.func @transform_2(%arg0: i32) -> (i32, i32) {
    %c0_i32 = arith.constant 0 : i32
    %c0_i32_0 = arith.constant 0 : i32
    %c0_i32_1 = arith.constant 0 : i32
    return %c0_i32, %c0_i32_0 : i32, i32
  }
  func.func @transform_3(%arg0: i32) -> (i32, i32) {
    %c0_i32 = arith.constant 0 : i32
    %c0_i32_0 = arith.constant 0 : i32
    %c0_i32_1 = arith.constant 0 : i32
    return %c0_i32, %c0_i32_0 : i32, i32
  }
  func.func @transform_4(%arg0: i32) -> (i32, i32) {
    %c0_i32 = arith.constant 0 : i32
    %c0_i32_0 = arith.constant 0 : i32
    return %arg0, %c0_i32 : i32, i32
  }
}

module attributes {stable_mosaic.version = 11 : i64} {
  func.func @_tip_resident_kernel(%arg0: i32, %arg1: memref<16x32xbf16, #tpu.memory_space<vmem>>, %arg2: memref<32x128xbf16, #tpu.memory_space<vmem>>, %arg3: memref<128x128xbf16, #tpu.memory_space<vmem>>, %arg4: memref<32x128xbf16, #tpu.memory_space<vmem>>, %arg5: memref<16x128xf32, #tpu.memory_space<vmem>>) attributes {dimension_semantics = [#tpu.dimension_semantics<parallel>], iteration_bounds = array<i64: 1>, scalar_prefetch = 0 : i64, scratch_operands = 0 : i64, tpu.core_type = #tpu.core_type<tc>, window_params = [{transform_indices = @transform_0, window_bounds = array<i64: 16, 32>}, {pipeline_mode = #tpu.pipeline_mode<synchronous>, transform_indices = @transform_1, window_bounds = array<i64: 32, 128>}, {pipeline_mode = #tpu.pipeline_mode<synchronous>, transform_indices = @transform_2, window_bounds = array<i64: 128, 128>}, {pipeline_mode = #tpu.pipeline_mode<synchronous>, transform_indices = @transform_3, window_bounds = array<i64: 32, 128>}, {transform_indices = @transform_4, window_bounds = array<i64: 16, 128>}]} {
    %c0 = arith.constant 0 : index
    %c0_0 = arith.constant 0 : index
    %0 = vector.load %arg1[%c0, %c0_0] : memref<16x32xbf16, #tpu.memory_space<vmem>>, vector<16x32xbf16>
    %c0_1 = arith.constant 0 : index
    %c0_2 = arith.constant 0 : index
    %1 = vector.load %arg4[%c0_1, %c0_2] : memref<32x128xbf16, #tpu.memory_space<vmem>>, vector<32x128xbf16>
    %cst = arith.constant dense<0.000000e+00> : vector<16x128xf32>
    %2 = tpu.matmul %0, %1, %cst {dimension_numbers = #tpu.dot_dimension_numbers<[1], [0], [0], [1], [0, 0, 1, 1], [], []>} : vector<16x32xbf16>, vector<32x128xbf16>, vector<16x128xf32> -> vector<16x128xf32>
    %c0_3 = arith.constant 0 : index
    %c0_4 = arith.constant 0 : index
    %3 = vector.load %arg1[%c0_3, %c0_4] : memref<16x32xbf16, #tpu.memory_space<vmem>>, vector<16x32xbf16>
    %c0_5 = arith.constant 0 : index
    %c0_6 = arith.constant 0 : index
    %4 = vector.load %arg2[%c0_5, %c0_6] : memref<32x128xbf16, #tpu.memory_space<vmem>>, vector<32x128xbf16>
    %cst_7 = arith.constant dense<0.000000e+00> : vector<16x128xf32>
    %5 = tpu.matmul %3, %4, %cst_7 {dimension_numbers = #tpu.dot_dimension_numbers<[1], [0], [0], [1], [0, 0, 1, 1], [], []>} : vector<16x32xbf16>, vector<32x128xbf16>, vector<16x128xf32> -> vector<16x128xf32>
    %6 = math.exp %5 : vector<16x128xf32>
    %7 = arith.truncf %6 : vector<16x128xf32> to vector<16x128xbf16>
    %c0_8 = arith.constant 0 : index
    %c0_9 = arith.constant 0 : index
    %8 = vector.load %arg3[%c0_8, %c0_9] : memref<128x128xbf16, #tpu.memory_space<vmem>>, vector<128x128xbf16>
    %cst_10 = arith.constant dense<0.000000e+00> : vector<16x128xf32>
    %9 = tpu.matmul %7, %8, %cst_10 {dimension_numbers = #tpu.dot_dimension_numbers<[1], [0], [0], [1], [0, 0, 1, 1], [], []>} : vector<16x128xbf16>, vector<128x128xbf16>, vector<16x128xf32> -> vector<16x128xf32>
    %10 = arith.addf %2, %9 : vector<16x128xf32>
    %c0_11 = arith.constant 0 : index
    %c0_12 = arith.constant 0 : index
    %11 = vector.load %arg5[%c0_11, %c0_12] : memref<16x128xf32, #tpu.memory_space<vmem>>, vector<16x128xf32>
    tpu.vector_store %arg5[%c0_11, %c0_12], %10 {strides = array<i32>} : memref<16x128xf32, #tpu.memory_space<vmem>>, vector<16x128xf32>,
    return
  }
  func.func @transform_0(%arg0: i32) -> (i32, i32) {
    %c0_i32 = arith.constant 0 : i32
    %c0_i32_0 = arith.constant 0 : i32
    return %arg0, %c0_i32 : i32, i32
  }
  func.func @transform_1(%arg0: i32) -> (i32, i32) {
    %c0_i32 = arith.constant 0 : i32
    %c0_i32_0 = arith.constant 0 : i32
    %c0_i32_1 = arith.constant 0 : i32
    return %c0_i32, %c0_i32_0 : i32, i32
  }
  func.func @transform_2(%arg0: i32) -> (i32, i32) {
    %c0_i32 = arith.constant 0 : i32
    %c0_i32_0 = arith.constant 0 : i32
    %c0_i32_1 = arith.constant 0 : i32
    return %c0_i32, %c0_i32_0 : i32, i32
  }
  func.func @transform_3(%arg0: i32) -> (i32, i32) {
    %c0_i32 = arith.constant 0 : i32
    %c0_i32_0 = arith.constant 0 : i32
    %c0_i32_1 = arith.constant 0 : i32
    return %c0_i32, %c0_i32_0 : i32, i32
  }
  func.func @transform_4(%arg0: i32) -> (i32, i32) {
    %c0_i32 = arith.constant 0 : i32
    %c0_i32_0 = arith.constant 0 : i32
    return %arg0, %c0_i32 : i32, i32
  }
}

</mosaic_0001>

<llo_original>
// kernel: tpu_custom_call.1
$region0: #{tpu_custom_call.1}
  #allocation0 [shape = 'u32[]', space=smem, size = 0x4, offset = 0x4, fixed_abs, tag = 'smem constant byte address 0x4 - core index']
  #allocation1 [shape = 'u32[144,128]{1,0:T(1,128)}', space=vmem, size = 0x12000, scoped, tag = 'internal scratch']
  %s0 = inlined_call_operand.hbm [shape: bf16[16,32], index: 0, kind: input, shape index: {}]
  %s1 = inlined_call_operand.hbm [shape: bf16[32,128], index: 1, kind: input, shape index: {}]
  %s2 = inlined_call_operand.hbm [shape: bf16[128,128], index: 2, kind: input, shape index: {}]
  %s3 = inlined_call_operand.hbm [shape: bf16[32,128], index: 3, kind: input, shape index: {}]
  %s4 = inlined_call_operand.hbm [shape: f32[16,128], index: 4, kind: output, shape index: {}]
  %s5 = sld [smem:[#allocation0]]
  $region42: #{tpu_custom_call.1} parent=0
    _
  %s7 = ssub.s32 1, %s5
  %s8 = scalar_select 0, %s7, %s5
  $region1: #{tpu_custom_call.1} parent=0
    #allocation2 [shape = 'u8[4096]{0}', space=vmem, size = 0x1000, scoped, tag = 'input window, operand 0, single buffered']
    #allocation3 [shape = 's32[1]{0}', space=sflag, size = 0x4, scoped, tag = 'scoped memory for tpu_custom_call.1']
    #allocation4 [shape = 's32[1]{0}', space=sflag, size = 0x4, scoped, tag = 'scoped memory for tpu_custom_call.1']
    #allocation5 [shape = 'u8[8192]{0}', space=vmem, size = 0x2000, scoped, tag = 'input window, operand 1, single buffered']
    #allocation6 [shape = 's32[1]{0}', space=sflag, size = 0x4, scoped, tag = 'scoped memory for tpu_custom_call.1']
    #allocation7 [shape = 'u8[32768]{0}', space=vmem, size = 0x8000, scoped, tag = 'input window, operand 2, single buffered']
    #allocation8 [shape = 'u8[8192]{0}', space=vmem, size = 0x2000, scoped, tag = 'input window, operand 3, single buffered']
    #allocation9 [shape = 's32[1]{0}', space=sflag, size = 0x4, scoped, tag = 'scoped memory for tpu_custom_call.1']
    #allocation10 [shape = 'u8[8192]{0}', space=vmem, size = 0x2000, scoped, tag = 'output window, operand 0, single buffered']
    %9 = vsyncpa [#allocation3], 0
    %10 = vsyncpa [#allocation6], 0
    %11 = vsyncpa [#allocation9], 0
    %12 = vsyncpa [#allocation4], 0
    // Predicated region
    $region2: #{tpu_custom_call.1} parent=1 // pred_check
      _
    $region3: #{tpu_custom_call.1} parent=1 // pred_check_branch
      %14 = sbr.rel (0) target = $region5
    $region4: #{tpu_custom_call.1} parent=1 // pred_region
      %s16 = ssub.s32 128, 128
      %17 = vsyncadd [#allocation3], %s16
      %s18 = sshll.u32 [#allocation2], 4
      %s19 = int_to_ptr.vmem [resolvable:$true] %s18
      %24 = dma.hbm_to_vmem [thread:$0]  %s0, 128, %s19, [#allocation3], 64, 64, 4
    $region5: #{tpu_custom_call.1} parent=1 // pred_fallthru
      _
    // Predicated region
    $region6: #{tpu_custom_call.1} parent=1 // pred_check
      _
    $region7: #{tpu_custom_call.1} parent=1 // pred_check_branch
      %26 = sbr.rel (0) target = $region9
    $region8: #{tpu_custom_call.1} parent=1 // pred_region
      %s28 = ssub.s32 256, 256
      %29 = vsyncadd [#allocation6], %s28
      %s30 = sshll.u32 [#allocation5], 4
      %s31 = int_to_ptr.vmem [resolvable:$true] %s30
      %36 = dma.hbm_to_vmem [thread:$0]  %s1, 256, %s31, [#allocation6], 64, 64, 4
    $region9: #{tpu_custom_call.1} parent=1 // pred_fallthru
      _
    // Predicated region
    $region10: #{tpu_custom_call.1} parent=1 // pred_check
      _
    $region11: #{tpu_custom_call.1} parent=1 // pred_check_branch
      %38 = sbr.rel (0) target = $region13
    $region12: #{tpu_custom_call.1} parent=1 // pred_region
      %s40 = ssub.s32 1024, 1024
      %41 = vsyncadd [#allocation6], %s40
      %s42 = sshll.u32 [#allocation7], 4
      %s43 = int_to_ptr.vmem [resolvable:$true] %s42
      %48 = dma.hbm_to_vmem [thread:$0]  %s2, 1024, %s43, [#allocation6], 64, 64, 4
    $region13: #{tpu_custom_call.1} parent=1 // pred_fallthru
      _
    // Predicated region
    $region14: #{tpu_custom_call.1} parent=1 // pred_check
      _
    $region15: #{tpu_custom_call.1} parent=1 // pred_check_branch
      %50 = sbr.rel (0) target = $region17
    $region16: #{tpu_custom_call.1} parent=1 // pred_region
      %s52 = ssub.s32 256, 256
      %53 = vsyncadd [#allocation9], %s52
      %s54 = sshll.u32 [#allocation8], 4
      %s55 = int_to_ptr.vmem [resolvable:$true] %s54
      %60 = dma.hbm_to_vmem [thread:$0]  %s3, 256, %s55, [#allocation9], 64, 64, 4
    $region17: #{tpu_custom_call.1} parent=1 // pred_fallthru
      _
    // Predicated region
    $region18: #{tpu_custom_call.1} parent=1 // pred_check
      _
    $region19: #{tpu_custom_call.1} parent=1 // pred_check_branch
      %62 = sbr.rel (0) target = $region21
    $region20: #{tpu_custom_call.1} parent=1 // pred_region
      %63 = dma.done [#allocation3], 128
    $region21: #{tpu_custom_call.1} parent=1 // pred_fallthru
      _
    // Predicated region
    $region22: #{tpu_custom_call.1} parent=1 // pred_check
      _
    $region23: #{tpu_custom_call.1} parent=1 // pred_check_branch
      %65 = sbr.rel (0) target = $region25
    $region24: #{tpu_custom_call.1} parent=1 // pred_region
      %66 = dma.done [#allocation6], 256
    $region25: #{tpu_custom_call.1} parent=1 // pred_fallthru
      _
    // Predicated region
    $region26: #{tpu_custom_call.1} parent=1 // pred_check
      _
    $region27: #{tpu_custom_call.1} parent=1 // pred_check_branch
      %68 = sbr.rel (0) target = $region29
    $region28: #{tpu_custom_call.1} parent=1 // pred_region
      %69 = dma.done [#allocation6], 1024
    $region29: #{tpu_custom_call.1} parent=1 // pred_fallthru
      _
    // Predicated region
    $region30: #{tpu_custom_call.1} parent=1 // pred_check
      _
    $region31: #{tpu_custom_call.1} parent=1 // pred_check_branch
      %71 = sbr.rel (0) target = $region33
    $region32: #{tpu_custom_call.1} parent=1 // pred_region
      %72 = dma.done [#allocation9], 256
    $region33: #{tpu_custom_call.1} parent=1 // pred_fallthru
      _
    %v74 = vld [vmem:[#allocation2] sm:$0xf]
    %v75 = vld [vmem:[#allocation2 + $0x4] sm:$0xf]
    %v76 = vld [vmem:[#allocation8] sm:$0xf]
    %v77 = vld [vmem:[#allocation8 + $0x4] sm:$0xf]
    %v78 = vld [vmem:[#allocation8 + $0x8] sm:$0xf]
    %v79 = vld [vmem:[#allocation8 + $0xc] sm:$0xf]
    %v80 = vld [vmem:[#allocation5] sm:$0xf]
    %v81 = vld [vmem:[#allocation5 + $0x4] sm:$0xf]
    %v82 = vld [vmem:[#allocation5 + $0x8] sm:$0xf]
    %v83 = vld [vmem:[#allocation5 + $0xc] sm:$0xf]
    %v86 = vunpack.c.l.b16 %v74
    %v87 = vunpack.c.l.b16 %v75
    %v88 = vpack.c.b16 %v87, %v86
    %v93 = vunpack.c.l.b16 %v80
    %v94 = vunpack.c.l.b16 %v81
    %v95 = vunpack.c.l.b16 %v82
    %v96 = vunpack.c.l.b16 %v83
    %v97 = vpack.c.b16 %v94, %v93
    %v98 = vpack.c.b16 %v96, %v95
    %vm101 = vcmask 261120
    %v103 = vsel %vm101, %v88, 0
    %105 = vmatprep.subr.bf16.mxu0 0
    %106 = vmatpush1.bf16.msra.mxu0 0
    %107 = vmatprep.subr.bf16.mxu0 0
    %108 = vmatpush1.bf16.msra.mxu0 0
    %109 = vmatprep.subr.bf16.mxu0 0
    %110 = vmatpush1.bf16.msra.mxu0 0
    %111 = vmatprep.subr.bf16.mxu0 0
    %112 = vmatpush1.bf16.msra.mxu0 0
    %113 = vmatprep.subr.bf16.mxu0 0
    %114 = vmatpush1.bf16.msra.mxu0 0
    %115 = vmatprep.subr.bf16.mxu0 0
    %116 = vmatpush1.bf16.msra.mxu0 0
    %117 = vmatprep.subr.bf16.mxu0 0
    %118 = vmatpush1.bf16.msra.mxu0 %v98
    %119 = vmatprep.subr.bf16.mxu0 0
    %120 = vmatpush1.bf16.msra.mxu0 %v97
    %121 = vmatprep.subr.bf16.mxu0 0
    %122 = vmatpush2.bf16.msra.mxu0 0
    %123 = vmatprep.subr.bf16.mxu0 0
    %124 = vmatpush2.bf16.msra.mxu0 0
    %125 = vmatprep.subr.bf16.mxu0 0
    %126 = vmatpush2.bf16.msra.mxu0 0
    %127 = vmatprep.subr.bf16.mxu0 0
    %128 = vmatpush2.bf16.msra.mxu0 0
    %129 = vmatprep.subr.bf16.mxu0 0
    %130 = vmatpush2.bf16.msra.mxu0 0
    %131 = vmatprep.subr.bf16.mxu0 0
    %132 = vmatpush2.bf16.msra.mxu0 0
    %133 = vmatprep.subr.bf16.mxu0 0
    %134 = vmatpush2.bf16.msra.mxu0 0
    %135 = vmatprep.subr.bf16.mxu0 0
    %136 = vmatpush2.bf16.msra.mxu0 0
    %137 = vmatprep.mubr.bf16.mxu0 0
    %138 = vmatmul.mubr.bf16.gmra.mxu0 %v103
    %v139 = vpop.f32.mrf.mxu0
    %v140 = vadd.f32 0.0, %v139
    %v141 = vpop.f32.mrf.mxu0
    %v142 = vpop.f32.mrf.mxu0
    %v143 = vadd.f32 0.0, %v142
    %v144 = vpop.f32.mrf.mxu0
    %145 = vdwg.mxu0
    %v146 = vmul.f32 %v140, 1.442695
    %v147 = vpow.pop %v146
    %v148 = vmul.f32 %v143, 1.442695
    %v149 = vpow.pop %v148
    %v150 = vpack.c.bf16 %v149, %v147
    %v151 = vld [vmem:[#allocation7] sm:$0xf]
    %v152 = vld [vmem:[#allocation7 + $0x4] sm:$0xf]
    %v153 = vld [vmem:[#allocation7 + $0x8] sm:$0xf]
    %v154 = vld [vmem:[#allocation7 + $0xc] sm:$0xf]
    %v155 = vld [vmem:[#allocation7 + $0x10] sm:$0xf]
    %v156 = vld [vmem:[#allocation7 + $0x14] sm:$0xf]
    %v157 = vld [vmem:[#allocation7 + $0x18] sm:$0xf]
    %v158 = vld [vmem:[#allocation7 + $0x1c] sm:$0xf]
    %v159 = vld [vmem:[#allocation7 + $0x20] sm:$0xf]
    %v160 = vld [vmem:[#allocation7 + $0x24] sm:$0xf]
    %v161 = vld [vmem:[#allocation7 + $0x28] sm:$0xf]
    %v162 = vld [vmem:[#allocation7 + $0x2c] sm:$0xf]
    %v163 = vld [vmem:[#allocation7 + $0x30] sm:$0xf]
    %v164 = vld [vmem:[#allocation7 + $0x34] sm:$0xf]
    %v165 = vld [vmem:[#allocation7 + $0x38] sm:$0xf]
    %v166 = vld [vmem:[#allocation7 + $0x3c] sm:$0xf]
    %v183 = vunpack.c.l.b16 %v151
    %v184 = vunpack.c.l.b16 %v152
    %v185 = vunpack.c.l.b16 %v153
    %v186 = vunpack.c.l.b16 %v154
    %v187 = vunpack.c.l.b16 %v155
    %v188 = vunpack.c.l.b16 %v156
    %v189 = vunpack.c.l.b16 %v157
    %v190 = vunpack.c.l.b16 %v158
    %v191 = vunpack.c.l.b16 %v159
    %v192 = vunpack.c.l.b16 %v160
    %v193 = vunpack.c.l.b16 %v161
    %v194 = vunpack.c.l.b16 %v162
    %v195 = vunpack.c.l.b16 %v163
    %v196 = vunpack.c.l.b16 %v164
    %v197 = vunpack.c.l.b16 %v165
    %v198 = vunpack.c.l.b16 %v166
    %v199 = vpack.c.b16 %v184, %v183
    %v200 = vpack.c.b16 %v186, %v185
    %v201 = vpack.c.b16 %v188, %v187
    %v202 = vpack.c.b16 %v190, %v189
    %v203 = vpack.c.b16 %v192, %v191
    %v204 = vpack.c.b16 %v194, %v193
    %v205 = vpack.c.b16 %v196, %v195
    %v206 = vpack.c.b16 %v198, %v197
    %215 = vmatprep.subr.bf16.mxu0 0
    %216 = vmatpush1.bf16.msra.mxu0 %v206
    %217 = vmatprep.subr.bf16.mxu0 0
    %218 = vmatpush1.bf16.msra.mxu0 %v205
    %219 = vmatprep.subr.bf16.mxu0 0
    %220 = vmatpush1.bf16.msra.mxu0 %v204
    %221 = vmatprep.subr.bf16.mxu0 0
    %222 = vmatpush1.bf16.msra.mxu0 %v203
    %223 = vmatprep.subr.bf16.mxu0 0
    %224 = vmatpush1.bf16.msra.mxu0 %v202
    %225 = vmatprep.subr.bf16.mxu0 0
    %226 = vmatpush1.bf16.msra.mxu0 %v201
    %227 = vmatprep.subr.bf16.mxu0 0
    %228 = vmatpush1.bf16.msra.mxu0 %v200
    %229 = vmatprep.subr.bf16.mxu0 0
    %230 = vmatpush1.bf16.msra.mxu0 %v199
    %231 = vmatprep.subr.bf16.mxu0 0
    %232 = vmatpush2.bf16.msra.mxu0 0
    %233 = vmatprep.subr.bf16.mxu0 0
    %234 = vmatpush2.bf16.msra.mxu0 0
    %235 = vmatprep.subr.bf16.mxu0 0
    %236 = vmatpush2.bf16.msra.mxu0 0
    %237 = vmatprep.subr.bf16.mxu0 0
    %238 = vmatpush2.bf16.msra.mxu0 0
    %239 = vmatprep.subr.bf16.mxu0 0
    %240 = vmatpush2.bf16.msra.mxu0 0
    %241 = vmatprep.subr.bf16.mxu0 0
    %242 = vmatpush2.bf16.msra.mxu0 0
    %243 = vmatprep.subr.bf16.mxu0 0
    %244 = vmatpush2.bf16.msra.mxu0 0
    %245 = vmatprep.subr.bf16.mxu0 0
    %246 = vmatpush2.bf16.msra.mxu0 0
    %247 = vmatprep.mubr.bf16.mxu0 0
    %248 = vmatmul.mubr.bf16.gmra.mxu0 %v150
    %v249 = vpop.f32.mrf.mxu0
    %v250 = vadd.f32 0.0, %v249
    %v251 = vpop.f32.mrf.mxu0
    %v252 = vpop.f32.mrf.mxu0
    %v253 = vadd.f32 0.0, %v252
    %v254 = vpop.f32.mrf.mxu0
    %255 = vdwg.mxu0
    %v260 = vunpack.c.l.b16 %v76
    %v261 = vunpack.c.l.b16 %v77
    %v262 = vunpack.c.l.b16 %v78
    %v263 = vunpack.c.l.b16 %v79
    %v264 = vpack.c.b16 %v261, %v260
    %v265 = vpack.c.b16 %v263, %v262
    %268 = vmatprep.subr.bf16.mxu0 0
    %269 = vmatpush1.bf16.msra.mxu0 0
    %270 = vmatprep.subr.bf16.mxu0 0
    %271 = vmatpush1.bf16.msra.mxu0 0
    %272 = vmatprep.subr.bf16.mxu0 0
    %273 = vmatpush1.bf16.msra.mxu0 0
    %274 = vmatprep.subr.bf16.mxu0 0
    %275 = vmatpush1.bf16.msra.mxu0 0
    %276 = vmatprep.subr.bf16.mxu0 0
    %277 = vmatpush1.bf16.msra.mxu0 0
    %278 = vmatprep.subr.bf16.mxu0 0
    %279 = vmatpush1.bf16.msra.mxu0 0
    %280 = vmatprep.subr.bf16.mxu0 0
    %281 = vmatpush1.bf16.msra.mxu0 %v265
    %282 = vmatprep.subr.bf16.mxu0 0
    %283 = vmatpush1.bf16.msra.mxu0 %v264
    %284 = vmatprep.subr.bf16.mxu0 0
    %285 = vmatpush2.bf16.msra.mxu0 0
    %286 = vmatprep.subr.bf16.mxu0 0
    %287 = vmatpush2.bf16.msra.mxu0 0
    %288 = vmatprep.subr.bf16.mxu0 0
    %289 = vmatpush2.bf16.msra.mxu0 0
    %290 = vmatprep.subr.bf16.mxu0 0
    %291 = vmatpush2.bf16.msra.mxu0 0
    %292 = vmatprep.subr.bf16.mxu0 0
    %293 = vmatpush2.bf16.msra.mxu0 0
    %294 = vmatprep.subr.bf16.mxu0 0
    %295 = vmatpush2.bf16.msra.mxu0 0
    %296 = vmatprep.subr.bf16.mxu0 0
    %297 = vmatpush2.bf16.msra.mxu0 0
    %298 = vmatprep.subr.bf16.mxu0 0
    %299 = vmatpush2.bf16.msra.mxu0 0
    %300 = vmatprep.mubr.bf16.mxu0 0
    %301 = vmatmul.mubr.bf16.gmra.mxu0 %v103
    %v302 = vpop.f32.mrf.mxu0
    %v303 = vadd.f32 %v250, %v302
    %v304 = vpop.f32.mrf.mxu0
    %v305 = vpop.f32.mrf.mxu0
    %v306 = vadd.f32 %v253, %v305
    %v307 = vpop.f32.mrf.mxu0
    %308 = vdwg.mxu0
    %309 = vst [vmem:[#allocation10] sm:$0xff] %v303
    %310 = vst [vmem:[#allocation10 + $0x8] sm:$0xff] %v306
    // Predicated region
    $region34: #{tpu_custom_call.1} parent=1 // pred_check
      _
    $region35: #{tpu_custom_call.1} parent=1 // pred_check_branch
      %312 = sbr.rel (0) target = $region37
    $region36: #{tpu_custom_call.1} parent=1 // pred_region
      %s314 = ssub.s32 256, 256
      %315 = vsyncadd [#allocation4], %s314
      %s316 = sshll.u32 [#allocation10], 4
      %s317 = int_to_ptr.vmem [resolvable:$true] %s316
      %322 = dma.vmem_to_hbm [thread:$0]  %s317, 256, %s4, [#allocation4], 128, 128, 8
    $region37: #{tpu_custom_call.1} parent=1 // pred_fallthru
      _
    // Predicated region
    $region38: #{tpu_custom_call.1} parent=1 // pred_check
      _
    $region39: #{tpu_custom_call.1} parent=1 // pred_check_branch
      %324 = sbr.rel (0) target = $region41
    $region40: #{tpu_custom_call.1} parent=1 // pred_region
      %325 = dma.done [#allocation4], 256
    $region41: #{tpu_custom_call.1} parent=1 // pred_fallthru
      _
    %326 = vsyncpa [#allocation3], 1
    %327 = vsyncpa [#allocation6], 1
    %328 = vsyncpa [#allocation9], 1
    %329 = vsyncpa [#allocation4], 1

// kernel: tpu_custom_call.1
$region0: #{tpu_custom_call.1}
  #allocation0 [shape = 'u32[]', space=smem, size = 0x4, offset = 0x4, fixed_abs, tag = 'smem constant byte address 0x4 - core index']
  #allocation1 [shape = 'u32[144,128]{1,0:T(1,128)}', space=vmem, size = 0x12000, scoped, tag = 'internal scratch']
  %s0 = inlined_call_operand.hbm [shape: bf16[16,32], index: 0, kind: input, shape index: {}]
  %s1 = inlined_call_operand.hbm [shape: bf16[32,128], index: 1, kind: input, shape index: {}]
  %s2 = inlined_call_operand.hbm [shape: bf16[128,128], index: 2, kind: input, shape index: {}]
  %s3 = inlined_call_operand.hbm [shape: bf16[32,128], index: 3, kind: input, shape index: {}]
  %s4 = inlined_call_operand.hbm [shape: f32[16,128], index: 4, kind: output, shape index: {}]
  %s5 = sld [smem:[#allocation0]]
  $region42: #{tpu_custom_call.1} parent=0
    _
  %s7 = ssub.s32 1, %s5
  %s8 = scalar_select 0, %s7, %s5
  $region1: #{tpu_custom_call.1} parent=0
    #allocation2 [shape = 'u8[4096]{0}', space=vmem, size = 0x1000, scoped, tag = 'input window, operand 0, single buffered']
    #allocation3 [shape = 's32[1]{0}', space=sflag, size = 0x4, scoped, tag = 'scoped memory for tpu_custom_call.1']
    #allocation4 [shape = 's32[1]{0}', space=sflag, size = 0x4, scoped, tag = 'scoped memory for tpu_custom_call.1']
    #allocation5 [shape = 'u8[8192]{0}', space=vmem, size = 0x2000, scoped, tag = 'input window, operand 1, single buffered']
    #allocation6 [shape = 's32[1]{0}', space=sflag, size = 0x4, scoped, tag = 'scoped memory for tpu_custom_call.1']
    #allocation7 [shape = 'u8[32768]{0}', space=vmem, size = 0x8000, scoped, tag = 'input window, operand 2, single buffered']
    #allocation8 [shape = 'u8[8192]{0}', space=vmem, size = 0x2000, scoped, tag = 'input window, operand 3, single buffered']
    #allocation9 [shape = 's32[1]{0}', space=sflag, size = 0x4, scoped, tag = 'scoped memory for tpu_custom_call.1']
    #allocation10 [shape = 'u8[8192]{0}', space=vmem, size = 0x2000, scoped, tag = 'output window, operand 0, single buffered']
    %9 = vsyncpa [#allocation3], 0
    %10 = vsyncpa [#allocation6], 0
    %11 = vsyncpa [#allocation9], 0
    %12 = vsyncpa [#allocation4], 0
    // Predicated region
    $region2: #{tpu_custom_call.1} parent=1 // pred_check
      _
    $region3: #{tpu_custom_call.1} parent=1 // pred_check_branch
      %14 = sbr.rel (0) target = $region5
    $region4: #{tpu_custom_call.1} parent=1 // pred_region
      %s16 = ssub.s32 128, 128
      %17 = vsyncadd [#allocation3], %s16
      %s18 = sshll.u32 [#allocation2], 4
      %s19 = int_to_ptr.vmem [resolvable:$true] %s18
      %24 = dma.hbm_to_vmem [thread:$0]  %s0, 128, %s19, [#allocation3], 64, 64, 4
    $region5: #{tpu_custom_call.1} parent=1 // pred_fallthru
      _
    // Predicated region
    $region6: #{tpu_custom_call.1} parent=1 // pred_check
      _
    $region7: #{tpu_custom_call.1} parent=1 // pred_check_branch
      %26 = sbr.rel (0) target = $region9
    $region8: #{tpu_custom_call.1} parent=1 // pred_region
      %s28 = ssub.s32 256, 256
      %29 = vsyncadd [#allocation6], %s28
      %s30 = sshll.u32 [#allocation5], 4
      %s31 = int_to_ptr.vmem [resolvable:$true] %s30
      %36 = dma.hbm_to_vmem [thread:$0]  %s1, 256, %s31, [#allocation6], 64, 64, 4
    $region9: #{tpu_custom_call.1} parent=1 // pred_fallthru
      _
    // Predicated region
    $region10: #{tpu_custom_call.1} parent=1 // pred_check
      _
    $region11: #{tpu_custom_call.1} parent=1 // pred_check_branch
      %38 = sbr.rel (0) target = $region13
    $region12: #{tpu_custom_call.1} parent=1 // pred_region
      %s40 = ssub.s32 1024, 1024
      %41 = vsyncadd [#allocation6], %s40
      %s42 = sshll.u32 [#allocation7], 4
      %s43 = int_to_ptr.vmem [resolvable:$true] %s42
      %48 = dma.hbm_to_vmem [thread:$0]  %s2, 1024, %s43, [#allocation6], 64, 64, 4
    $region13: #{tpu_custom_call.1} parent=1 // pred_fallthru
      _
    // Predicated region
    $region14: #{tpu_custom_call.1} parent=1 // pred_check
      _
    $region15: #{tpu_custom_call.1} parent=1 // pred_check_branch
      %50 = sbr.rel (0) target = $region17
    $region16: #{tpu_custom_call.1} parent=1 // pred_region
      %s52 = ssub.s32 256, 256
      %53 = vsyncadd [#allocation9], %s52
      %s54 = sshll.u32 [#allocation8], 4
      %s55 = int_to_ptr.vmem [resolvable:$true] %s54
      %60 = dma.hbm_to_vmem [thread:$0]  %s3, 256, %s55, [#allocation9], 64, 64, 4
    $region17: #{tpu_custom_call.1} parent=1 // pred_fallthru
      _
    // Predicated region
    $region18: #{tpu_custom_call.1} parent=1 // pred_check
      _
    $region19: #{tpu_custom_call.1} parent=1 // pred_check_branch
      %62 = sbr.rel (0) target = $region21
    $region20: #{tpu_custom_call.1} parent=1 // pred_region
      %63 = dma.done [#allocation3], 128
    $region21: #{tpu_custom_call.1} parent=1 // pred_fallthru
      _
    // Predicated region
    $region22: #{tpu_custom_call.1} parent=1 // pred_check
      _
    $region23: #{tpu_custom_call.1} parent=1 // pred_check_branch
      %65 = sbr.rel (0) target = $region25
    $region24: #{tpu_custom_call.1} parent=1 // pred_region
      %66 = dma.done [#allocation6], 256
    $region25: #{tpu_custom_call.1} parent=1 // pred_fallthru
      _
    // Predicated region
    $region26: #{tpu_custom_call.1} parent=1 // pred_check
      _
    $region27: #{tpu_custom_call.1} parent=1 // pred_check_branch
      %68 = sbr.rel (0) target = $region29
    $region28: #{tpu_custom_call.1} parent=1 // pred_region
      %69 = dma.done [#allocation6], 1024
    $region29: #{tpu_custom_call.1} parent=1 // pred_fallthru
      _
    // Predicated region
    $region30: #{tpu_custom_call.1} parent=1 // pred_check
      _
    $region31: #{tpu_custom_call.1} parent=1 // pred_check_branch
      %71 = sbr.rel (0) target = $region33
    $region32: #{tpu_custom_call.1} parent=1 // pred_region
      %72 = dma.done [#allocation9], 256
    $region33: #{tpu_custom_call.1} parent=1 // pred_fallthru
      _
    %v74 = vld [vmem:[#allocation2] sm:$0xf]
    %v75 = vld [vmem:[#allocation2 + $0x4] sm:$0xf]
    %v76 = vld [vmem:[#allocation8] sm:$0xf]
    %v77 = vld [vmem:[#allocation8 + $0x4] sm:$0xf]
    %v78 = vld [vmem:[#allocation8 + $0x8] sm:$0xf]
    %v79 = vld [vmem:[#allocation8 + $0xc] sm:$0xf]
    %v80 = vld [vmem:[#allocation5] sm:$0xf]
    %v81 = vld [vmem:[#allocation5 + $0x4] sm:$0xf]
    %v82 = vld [vmem:[#allocation5 + $0x8] sm:$0xf]
    %v83 = vld [vmem:[#allocation5 + $0xc] sm:$0xf]
    %v86 = vunpack.c.l.b16 %v74
    %v87 = vunpack.c.l.b16 %v75
    %v88 = vpack.c.b16 %v87, %v86
    %v93 = vunpack.c.l.b16 %v80
    %v94 = vunpack.c.l.b16 %v81
    %v95 = vunpack.c.l.b16 %v82
    %v96 = vunpack.c.l.b16 %v83
    %v97 = vpack.c.b16 %v94, %v93
    %v98 = vpack.c.b16 %v96, %v95
    %vm101 = vcmask 261120
    %v103 = vsel %vm101, %v88, 0
    %105 = vmatprep.subr.bf16.mxu0 0
    %106 = vmatpush1.bf16.msra.mxu0 0
    %107 = vmatprep.subr.bf16.mxu0 0
    %108 = vmatpush1.bf16.msra.mxu0 0
    %109 = vmatprep.subr.bf16.mxu0 0
    %110 = vmatpush1.bf16.msra.mxu0 0
    %111 = vmatprep.subr.bf16.mxu0 0
    %112 = vmatpush1.bf16.msra.mxu0 0
    %113 = vmatprep.subr.bf16.mxu0 0
    %114 = vmatpush1.bf16.msra.mxu0 0
    %115 = vmatprep.subr.bf16.mxu0 0
    %116 = vmatpush1.bf16.msra.mxu0 0
    %117 = vmatprep.subr.bf16.mxu0 0
    %118 = vmatpush1.bf16.msra.mxu0 %v98
    %119 = vmatprep.subr.bf16.mxu0 0
    %120 = vmatpush1.bf16.msra.mxu0 %v97
    %121 = vmatprep.subr.bf16.mxu0 0
    %122 = vmatpush2.bf16.msra.mxu0 0
    %123 = vmatprep.subr.bf16.mxu0 0
    %124 = vmatpush2.bf16.msra.mxu0 0
    %125 = vmatprep.subr.bf16.mxu0 0
    %126 = vmatpush2.bf16.msra.mxu0 0
    %127 = vmatprep.subr.bf16.mxu0 0
    %128 = vmatpush2.bf16.msra.mxu0 0
    %129 = vmatprep.subr.bf16.mxu0 0
    %130 = vmatpush2.bf16.msra.mxu0 0
    %131 = vmatprep.subr.bf16.mxu0 0
    %132 = vmatpush2.bf16.msra.mxu0 0
    %133 = vmatprep.subr.bf16.mxu0 0
    %134 = vmatpush2.bf16.msra.mxu0 0
    %135 = vmatprep.subr.bf16.mxu0 0
    %136 = vmatpush2.bf16.msra.mxu0 0
    %137 = vmatprep.mubr.bf16.mxu0 0
    %138 = vmatmul.mubr.bf16.gmra.mxu0 %v103
    %v139 = vpop.f32.mrf.mxu0
    %v140 = vadd.f32 0.0, %v139
    %v141 = vpop.f32.mrf.mxu0
    %v142 = vpop.f32.mrf.mxu0
    %v143 = vadd.f32 0.0, %v142
    %v144 = vpop.f32.mrf.mxu0
    %145 = vdwg.mxu0
    %v146 = vmul.f32 %v140, 1.442695
    %v147 = vpow.pop %v146
    %v148 = vmul.f32 %v143, 1.442695
    %v149 = vpow.pop %v148
    %v150 = vpack.c.bf16 %v149, %v147
    %v151 = vld [vmem:[#allocation7] sm:$0xf]
    %v152 = vld [vmem:[#allocation7 + $0x4] sm:$0xf]
    %v153 = vld [vmem:[#allocation7 + $0x8] sm:$0xf]
    %v154 = vld [vmem:[#allocation7 + $0xc] sm:$0xf]
    %v155 = vld [vmem:[#allocation7 + $0x10] sm:$0xf]
    %v156 = vld [vmem:[#allocation7 + $0x14] sm:$0xf]
    %v157 = vld [vmem:[#allocation7 + $0x18] sm:$0xf]
    %v158 = vld [vmem:[#allocation7 + $0x1c] sm:$0xf]
    %v159 = vld [vmem:[#allocation7 + $0x20] sm:$0xf]
    %v160 = vld [vmem:[#allocation7 + $0x24] sm:$0xf]
    %v161 = vld [vmem:[#allocation7 + $0x28] sm:$0xf]
    %v162 = vld [vmem:[#allocation7 + $0x2c] sm:$0xf]
    %v163 = vld [vmem:[#allocation7 + $0x30] sm:$0xf]
    %v164 = vld [vmem:[#allocation7 + $0x34] sm:$0xf]
    %v165 = vld [vmem:[#allocation7 + $0x38] sm:$0xf]
    %v166 = vld [vmem:[#allocation7 + $0x3c] sm:$0xf]
    %v183 = vunpack.c.l.b16 %v151
    %v184 = vunpack.c.l.b16 %v152
    %v185 = vunpack.c.l.b16 %v153
    %v186 = vunpack.c.l.b16 %v154
    %v187 = vunpack.c.l.b16 %v155
    %v188 = vunpack.c.l.b16 %v156
    %v189 = vunpack.c.l.b16 %v157
    %v190 = vunpack.c.l.b16 %v158
    %v191 = vunpack.c.l.b16 %v159
    %v192 = vunpack.c.l.b16 %v160
    %v193 = vunpack.c.l.b16 %v161
    %v194 = vunpack.c.l.b16 %v162
    %v195 = vunpack.c.l.b16 %v163
    %v196 = vunpack.c.l.b16 %v164
    %v197 = vunpack.c.l.b16 %v165
    %v198 = vunpack.c.l.b16 %v166
    %v199 = vpack.c.b16 %v184, %v183
    %v200 = vpack.c.b16 %v186, %v185
    %v201 = vpack.c.b16 %v188, %v187
    %v202 = vpack.c.b16 %v190, %v189
    %v203 = vpack.c.b16 %v192, %v191
    %v204 = vpack.c.b16 %v194, %v193
    %v205 = vpack.c.b16 %v196, %v195
    %v206 = vpack.c.b16 %v198, %v197
    %215 = vmatprep.subr.bf16.mxu0 0
    %216 = vmatpush1.bf16.msra.mxu0 %v206
    %217 = vmatprep.subr.bf16.mxu0 0
    %218 = vmatpush1.bf16.msra.mxu0 %v205
    %219 = vmatprep.subr.bf16.mxu0 0
    %220 = vmatpush1.bf16.msra.mxu0 %v204
    %221 = vmatprep.subr.bf16.mxu0 0
    %222 = vmatpush1.bf16.msra.mxu0 %v203
    %223 = vmatprep.subr.bf16.mxu0 0
    %224 = vmatpush1.bf16.msra.mxu0 %v202
    %225 = vmatprep.subr.bf16.mxu0 0
    %226 = vmatpush1.bf16.msra.mxu0 %v201
    %227 = vmatprep.subr.bf16.mxu0 0
    %228 = vmatpush1.bf16.msra.mxu0 %v200
    %229 = vmatprep.subr.bf16.mxu0 0
    %230 = vmatpush1.bf16.msra.mxu0 %v199
    %231 = vmatprep.subr.bf16.mxu0 0
    %232 = vmatpush2.bf16.msra.mxu0 0
    %233 = vmatprep.subr.bf16.mxu0 0
    %234 = vmatpush2.bf16.msra.mxu0 0
    %235 = vmatprep.subr.bf16.mxu0 0
    %236 = vmatpush2.bf16.msra.mxu0 0
    %237 = vmatprep.subr.bf16.mxu0 0
    %238 = vmatpush2.bf16.msra.mxu0 0
    %239 = vmatprep.subr.bf16.mxu0 0
    %240 = vmatpush2.bf16.msra.mxu0 0
    %241 = vmatprep.subr.bf16.mxu0 0
    %242 = vmatpush2.bf16.msra.mxu0 0
    %243 = vmatprep.subr.bf16.mxu0 0
    %244 = vmatpush2.bf16.msra.mxu0 0
    %245 = vmatprep.subr.bf16.mxu0 0
    %246 = vmatpush2.bf16.msra.mxu0 0
    %247 = vmatprep.mubr.bf16.mxu0 0
    %248 = vmatmul.mubr.bf16.gmra.mxu0 %v150
    %v249 = vpop.f32.mrf.mxu0
    %v250 = vadd.f32 0.0, %v249
    %v251 = vpop.f32.mrf.mxu0
    %v252 = vpop.f32.mrf.mxu0
    %v253 = vadd.f32 0.0, %v252
    %v254 = vpop.f32.mrf.mxu0
    %255 = vdwg.mxu0
    %v260 = vunpack.c.l.b16 %v76
    %v261 = vunpack.c.l.b16 %v77
    %v262 = vunpack.c.l.b16 %v78
    %v263 = vunpack.c.l.b16 %v79
    %v264 = vpack.c.b16 %v261, %v260
    %v265 = vpack.c.b16 %v263, %v262
    %268 = vmatprep.subr.bf16.mxu0 0
    %269 = vmatpush1.bf16.msra.mxu0 0
    %270 = vmatprep.subr.bf16.mxu0 0
    %271 = vmatpush1.bf16.msra.mxu0 0
    %272 = vmatprep.subr.bf16.mxu0 0
    %273 = vmatpush1.bf16.msra.mxu0 0
    %274 = vmatprep.subr.bf16.mxu0 0
    %275 = vmatpush1.bf16.msra.mxu0 0
    %276 = vmatprep.subr.bf16.mxu0 0
    %277 = vmatpush1.bf16.msra.mxu0 0
    %278 = vmatprep.subr.bf16.mxu0 0
    %279 = vmatpush1.bf16.msra.mxu0 0
    %280 = vmatprep.subr.bf16.mxu0 0
    %281 = vmatpush1.bf16.msra.mxu0 %v265
    %282 = vmatprep.subr.bf16.mxu0 0
    %283 = vmatpush1.bf16.msra.mxu0 %v264
    %284 = vmatprep.subr.bf16.mxu0 0
    %285 = vmatpush2.bf16.msra.mxu0 0
    %286 = vmatprep.subr.bf16.mxu0 0
    %287 = vmatpush2.bf16.msra.mxu0 0
    %288 = vmatprep.subr.bf16.mxu0 0
    %289 = vmatpush2.bf16.msra.mxu0 0
    %290 = vmatprep.subr.bf16.mxu0 0
    %291 = vmatpush2.bf16.msra.mxu0 0
    %292 = vmatprep.subr.bf16.mxu0 0
    %293 = vmatpush2.bf16.msra.mxu0 0
    %294 = vmatprep.subr.bf16.mxu0 0
    %295 = vmatpush2.bf16.msra.mxu0 0
    %296 = vmatprep.subr.bf16.mxu0 0
    %297 = vmatpush2.bf16.msra.mxu0 0
    %298 = vmatprep.subr.bf16.mxu0 0
    %299 = vmatpush2.bf16.msra.mxu0 0
    %300 = vmatprep.mubr.bf16.mxu0 0
    %301 = vmatmul.mubr.bf16.gmra.mxu0 %v103
    %v302 = vpop.f32.mrf.mxu0
    %v303 = vadd.f32 %v250, %v302
    %v304 = vpop.f32.mrf.mxu0
    %v305 = vpop.f32.mrf.mxu0
    %v306 = vadd.f32 %v253, %v305
    %v307 = vpop.f32.mrf.mxu0
    %308 = vdwg.mxu0
    %309 = vst [vmem:[#allocation10] sm:$0xff] %v303
    %310 = vst [vmem:[#allocation10 + $0x8] sm:$0xff] %v306
    // Predicated region
    $region34: #{tpu_custom_call.1} parent=1 // pred_check
      _
    $region35: #{tpu_custom_call.1} parent=1 // pred_check_branch
      %312 = sbr.rel (0) target = $region37
    $region36: #{tpu_custom_call.1} parent=1 // pred_region
      %s314 = ssub.s32 256, 256
      %315 = vsyncadd [#allocation4], %s314
      %s316 = sshll.u32 [#allocation10], 4
      %s317 = int_to_ptr.vmem [resolvable:$true] %s316
      %322 = dma.vmem_to_hbm [thread:$0]  %s317, 256, %s4, [#allocation4], 128, 128, 8
    $region37: #{tpu_custom_call.1} parent=1 // pred_fallthru
      _
    // Predicated region
    $region38: #{tpu_custom_call.1} parent=1 // pred_check
      _
    $region39: #{tpu_custom_call.1} parent=1 // pred_check_branch
      %324 = sbr.rel (0) target = $region41
    $region40: #{tpu_custom_call.1} parent=1 // pred_region
      %325 = dma.done [#allocation4], 256
    $region41: #{tpu_custom_call.1} parent=1 // pred_fallthru
      _
    %326 = vsyncpa [#allocation3], 1
    %327 = vsyncpa [#allocation6], 1
    %328 = vsyncpa [#allocation9], 1
    %329 = vsyncpa [#allocation4], 1

</llo_original>
